<compile_context>
chip_gen: v7x
topology: tpu7x:2x2x1
jax: 0.10.0
libtpu: 0.0.40
codegen_flags: <defaults>
</compile_context>

<pallas_src>
import functools

import jax
import jax.numpy as jnp
from jax.experimental import pallas as pl
from jax.experimental.pallas import tpu as pltpu

_LANE = 128   # weights' K (layers >= 1) and N are zero-padded to this


def _round_up(x, m):
    return (x + m - 1) // m * m


def _fused_mlp_kernel(num_layers, pdims, x_ref, *refs):
    """Fused MLP chain with manually double-buffered (streamed) weights.

    refs layout:
      refs[2*i]     : weight of layer i (i == 0: VMEM ref; i >= 1: raw HBM ref)
      refs[2*i + 1] : bias of layer i   (VMEM, f32, shape (1, n_pad_i))
      refs[2*L]     : output ref (VMEM)
      refs[2*L + 1] : (only if L > 1) weight double-buffer (2, Kmax, Nmax)
      refs[2*L + 2] : (only if L > 1) DMA semaphores (2,)

    pdims[i] = stored (padded) weight shape (k_pad_i, n_pad_i) of layer i.
    Static Python loop -> one traced chain of MXU matmuls; the activation
    never leaves the core between layers.
    """
    L = num_layers
    o_ref = refs[2 * L]

    if L > 1:
        wbuf = refs[2 * L + 1]
        sem = refs[2 * L + 2]

        def stream_copy(i, slot):
            k_i, n_i = pdims[i]
            return pltpu.make_async_copy(
                refs[2 * i],
                wbuf.at[slot, pl.ds(0, k_i), pl.ds(0, n_i)],
                sem.at[slot])

        # Prefetch layer 1's weight while layer 0 (VMEM-resident) computes.
        stream_copy(1, 1).start()

    a = x_ref[...].astype(jnp.float32)
    for i in range(L):
        k_i, n_i = pdims[i]
        if i == 0:
            w = refs[0][...]
        else:
            slot = i & 1
            stream_copy(i, slot).wait()
            if i + 1 < L:                      # overlap next weight DMA
                stream_copy(i + 1, 1 - slot).start()
            w = wbuf[slot, pl.ds(0, k_i), pl.ds(0, n_i)]
        acc = jnp.dot(a.astype(w.dtype), w, preferred_element_type=jnp.float32)
        a = acc + refs[2 * i + 1][...]         # f32 bias add on all generations
    o_ref[...] = a.astype(o_ref.dtype)


class StigmergicModulePallas:
    """Sequential container mirroring torchsnn.StigmergicModule.forward."""

    def __init__(self, inputs=None, outputs=None, param_dtype=jnp.bfloat16):
        self.n_inputs = inputs
        self.n_outputs = outputs
        self.param_dtype = param_dtype       # bf16 default: weight-DMA bound regime
        self._layers = []                    # [(W_padded (K,N), b_padded (1,N) f32)]
        self._dims = []                      # [(in_features, out_features)]
        self._fwd_cache = {}                 # n_apply -> jitted fused forward

    def add_linear(self, key, in_features, out_features):
        if self._dims:
            assert in_features == self._dims[-1][1], (
                "layer input dim must match previous layer output dim")
        kw, kb = jax.random.split(key)
        # PyTorch nn.Linear default init: U(-1/sqrt(in), 1/sqrt(in))
        bound = 1.0 / (in_features ** 0.5)
        w = jax.random.uniform(kw, (out_features, in_features), jnp.float32,
                               minval=-bound, maxval=bound)
        b = jax.random.uniform(kb, (out_features,), jnp.float32,
                               minval=-bound, maxval=bound)
        n_pad = _round_up(out_features, _LANE)
        # Layer 0 keeps K un-padded so the raw x feeds the MXU with no host or
        # in-kernel padding; later layers pad K up to the previous layer's
        # padded N (extra rows are zero, so the exactly-zero padded activation
        # columns contribute nothing).
        k_pad = in_features if not self._layers else _round_up(in_features, _LANE)
        w_t = jnp.zeros((k_pad, n_pad), self.param_dtype)
        w_t = w_t.at[:in_features, :out_features].set(
            jnp.transpose(w).astype(self.param_dtype))
        b_pad = jnp.zeros((1, n_pad), jnp.float32).at[0, :out_features].set(b)
        self._layers.append((w_t, b_pad))
        self._dims.append((in_features, out_features))
        self._fwd_cache.clear()

    # ---- fused forward construction --------------------------------------

    def _build_forward(self, n_apply):
        layers = self._layers[:n_apply]
        pdims = tuple((w.shape[0], w.shape[1]) for w, _ in layers)
        out_true = self._dims[n_apply - 1][1]
        n_pad_last = pdims[-1][1]
        param_itemsize = jnp.dtype(self.param_dtype).itemsize
        kernel = functools.partial(_fused_mlp_kernel, n_apply, pdims)

        if n_apply > 1:
            k_max = max(k for k, _ in pdims[1:])
            n_max = max(n for _, n in pdims[1:])
            scratch_shapes = [pltpu.VMEM((2, k_max, n_max), self.param_dtype),
                              pltpu.SemaphoreType.DMA((2,))]
            wbuf_bytes = 2 * k_max * n_max * param_itemsize
        else:
            scratch_shapes = []
            wbuf_bytes = 0

        def fwd(x, *flat_params):
            b_true = x.shape[0]
            # All VMEM blocks equal their full array dims (exempt from the
            # (8,128) rule); streamed weights stay in HBM via pl.ANY.
            in_specs = [pl.BlockSpec(x.shape, lambda: (0, 0))]
            vmem_bytes = x.size * x.dtype.itemsize + wbuf_bytes
            for j, p in enumerate(flat_params):
                streamed_weight = (j % 2 == 0) and (j > 0)
                if streamed_weight:
                    in_specs.append(pl.BlockSpec(memory_space=pl.ANY))
                else:
                    in_specs.append(pl.BlockSpec(p.shape, lambda: (0, 0)))
                    vmem_bytes += p.size * jnp.dtype(p.dtype).itemsize
            vmem_bytes += b_true * n_pad_last * x.dtype.itemsize   # output slab
            # Scoped-VMEM defaults (16/32 MiB) are far below physical; request
            # what we actually use (x2 slack for compiler scratch / hidden
            # buffering), kept under v7x's 64 MiB physical ceiling.
            vmem_limit = int(min(max(2 * vmem_bytes + (4 << 20), 32 << 20),
                                 60 << 20))

            out = pl.pallas_call(
                kernel,
                out_shape=jax.ShapeDtypeStruct((b_true, n_pad_last), x.dtype),
                in_specs=in_specs,
                out_specs=pl.BlockSpec((b_true, n_pad_last), lambda: (0, 0)),
                scratch_shapes=scratch_shapes,
                compiler_params=pltpu.CompilerParams(
                    vmem_limit_bytes=vmem_limit),
            )(x, *flat_params)
            # Single lane-slice epilogue; the padded columns are exactly zero.
            return out[:, :out_true]

        return jax.jit(fwd)

    # ---- public API mirroring the PyTorch module --------------------------

    def forward(self, x, lastlayer=-1):
        # Matches PyTorch: 1-D input reshaped to (1, N); children run in
        # order, breaking BEFORE the child at index `lastlayer`.
        if x.ndim == 1:
            x = x.reshape(1, x.shape[0])
        if 0 <= lastlayer < len(self._layers):
            n_apply = lastlayer
        else:
            n_apply = len(self._layers)
        if n_apply == 0:
            return x
        if n_apply not in self._fwd_cache:
            self._fwd_cache[n_apply] = self._build_forward(n_apply)
        flat = []
        for w_t, b in self._layers[:n_apply]:
            flat.append(w_t)
            flat.append(b)
        return self._fwd_cache[n_apply](x, *flat)

    __call__ = forward

    # tick()/reset() in torchsnn only recurse into stigmergic children
    # (stateful time dynamics); there is no forward-pass compute to port.
    # TODO(synk): stigmergic soma tick/reset state dynamics are not modeled.
    def tick(self):
        pass

    def reset(self):
        pass


if __name__ == "__main__":
    key = jax.random.PRNGKey(0)
    k_in, k0, k1, k2, k3 = jax.random.split(key, 5)

    batch, n_in, n_hidden, n_out = 2, 32, 64, 16
    x = jax.random.normal(k_in, (batch, n_in), jnp.float32)

    def reference(net, xin, n_apply):
        ref = xin
        for (w_t, b), (k_t, n_t) in list(zip(net._layers, net._dims))[:n_apply]:
            w_true = w_t[:k_t, :n_t].astype(jnp.float32)
            b_true = b[0, :n_t]
            ref = ref @ w_true + b_true
        return ref

    # --- f32 parameters: exact path, tight tolerance ------------------------
    net32 = StigmergicModulePallas(inputs=n_in, outputs=n_out,
                                   param_dtype=jnp.float32)
    net32.add_linear(k0, n_in, n_hidden)
    net32.add_linear(k1, n_hidden, n_out)

    y = jax.block_until_ready(net32(x))                    # full fused forward
    assert y.shape == (batch, n_out)
    assert jnp.allclose(y, reference(net32, x, 2), atol=1e-5, rtol=1e-5)

    y_partial = jax.block_until_ready(net32(x, lastlayer=1))  # stop before idx 1
    assert y_partial.shape == (batch, n_hidden)
    assert jnp.allclose(y_partial, reference(net32, x, 1), atol=1e-5, rtol=1e-5)

    y_1d = jax.block_until_ready(net32(x[0]))              # 1-D reshape semantics
    assert y_1d.shape == (1, n_out)
    assert jnp.allclose(y_1d, reference(net32, x, 2)[:1], atol=1e-5, rtol=1e-5)

    y_id = net32(x, lastlayer=0)                           # apply zero layers
    assert jnp.allclose(y_id, x)

    # --- bf16 parameters (default): 3 layers to exercise the streamed
    # double-buffered weight path; looser tolerance for bf16 activation casts.
    net_bf16 = StigmergicModulePallas(inputs=n_in, outputs=n_out)
    net_bf16.add_linear(k0, n_in, n_hidden)
    net_bf16.add_linear(k2, n_hidden, n_hidden)
    net_bf16.add_linear(k3, n_hidden, n_out)

    yb = jax.block_until_ready(net_bf16(x))
    assert yb.shape == (batch, n_out)
    ref_b = reference(net_bf16, x, 3)
    rel_err = jnp.max(jnp.abs(yb - ref_b)) / (jnp.max(jnp.abs(ref_b)) + 1e-6)
    assert rel_err < 3e-2, f"bf16 relative error too large: {rel_err}"

    print("KERNEL_OK")
</pallas_src>

<mosaic_0001>
module attributes {stable_mosaic.version = 11 : i64} {
  func.func @_fused_mlp_kernel(%arg0: memref<2x32xf32, #tpu.memory_space<vmem>>, %arg1: memref<32x128xf32, #tpu.memory_space<vmem>>, %arg2: memref<1x128xf32, #tpu.memory_space<vmem>>, %arg3: memref<128x128xf32, #tpu.memory_space<any>>, %arg4: memref<1x128xf32, #tpu.memory_space<vmem>>, %arg5: memref<2x128xf32, #tpu.memory_space<vmem>>, %arg6: memref<2x128x128xf32, #tpu.memory_space<vmem>>, %arg7: memref<2x!tpu.dma_semaphore, #tpu.memory_space<semaphore_mem>>) attributes {dimension_semantics = [], scalar_prefetch = 0 : i64, scratch_operands = 2 : i64, tpu.core_type = #tpu.core_type<tc>} {
    %c1_i32 = arith.constant 1 : i32
    %c1_i32_0 = arith.constant 1 : i32
    %c0_i32 = arith.constant 0 : i32
    %c0_i32_1 = arith.constant 0 : i32
    %0 = tpu.memref_slice %arg6[%c1_i32, %c0_i32, %c0_i32_1] : memref<2x128x128xf32, #tpu.memory_space<vmem>> -> memref<1x128x128xf32, #tpu.memory_space<vmem>>
    %1 = tpu.memref_squeeze %0 : memref<1x128x128xf32, #tpu.memory_space<vmem>> -> memref<128x128xf32, #tpu.memory_space<vmem>>
    %2 = tpu.memref_slice %arg7[%c1_i32_0] : memref<2x!tpu.dma_semaphore, #tpu.memory_space<semaphore_mem>> -> memref<1x!tpu.dma_semaphore, #tpu.memory_space<semaphore_mem>>
    %3 = tpu.memref_squeeze %2 : memref<1x!tpu.dma_semaphore, #tpu.memory_space<semaphore_mem>> -> memref<!tpu.dma_semaphore, #tpu.memory_space<semaphore_mem>>
    tpu.enqueue_dma source(%arg3 : memref<128x128xf32, #tpu.memory_space<any>>) target(%1 : memref<128x128xf32, #tpu.memory_space<vmem>>) target_semaphore(%3 : memref<!tpu.dma_semaphore, #tpu.memory_space<semaphore_mem>>)
    %c0 = arith.constant 0 : index
    %c0_2 = arith.constant 0 : index
    %4 = vector.load %arg0[%c0, %c0_2] : memref<2x32xf32, #tpu.memory_space<vmem>>, vector<2x32xf32>
    %c0_3 = arith.constant 0 : index
    %c0_4 = arith.constant 0 : index
    %5 = vector.load %arg1[%c0_3, %c0_4] : memref<32x128xf32, #tpu.memory_space<vmem>>, vector<32x128xf32>
    %cst = arith.constant dense<0.000000e+00> : vector<2x128xf32>
    %6 = tpu.matmul %4, %5, %cst {dimension_numbers = #tpu.dot_dimension_numbers<[1], [0], [0], [1], [0, 0, 1, 1], [], []>} : vector<2x32xf32>, vector<32x128xf32>, vector<2x128xf32> -> vector<2x128xf32>
    %c0_5 = arith.constant 0 : index
    %c0_6 = arith.constant 0 : index
    %7 = vector.load %arg2[%c0_5, %c0_6] : memref<1x128xf32, #tpu.memory_space<vmem>>, vector<1x128xf32>
    %8 = vector.broadcast %7 : vector<1x128xf32> to vector<2x128xf32>
    %9 = arith.addf %6, %8 : vector<2x128xf32>
    %c1_i32_7 = arith.constant 1 : i32
    %c1_i32_8 = arith.constant 1 : i32
    %c0_i32_9 = arith.constant 0 : i32
    %c0_i32_10 = arith.constant 0 : i32
    %10 = tpu.memref_slice %arg6[%c1_i32_7, %c0_i32_9, %c0_i32_10] : memref<2x128x128xf32, #tpu.memory_space<vmem>> -> memref<1x128x128xf32, #tpu.memory_space<vmem>>
    %11 = tpu.memref_squeeze %10 : memref<1x128x128xf32, #tpu.memory_space<vmem>> -> memref<128x128xf32, #tpu.memory_space<vmem>>
    %12 = tpu.memref_slice %arg7[%c1_i32_8] : memref<2x!tpu.dma_semaphore, #tpu.memory_space<semaphore_mem>> -> memref<1x!tpu.dma_semaphore, #tpu.memory_space<semaphore_mem>>
    %13 = tpu.memref_squeeze %12 : memref<1x!tpu.dma_semaphore, #tpu.memory_space<semaphore_mem>> -> memref<!tpu.dma_semaphore, #tpu.memory_space<semaphore_mem>>
    tpu.wait_dma2 semaphore(%13 : memref<!tpu.dma_semaphore, #tpu.memory_space<semaphore_mem>>) src(%arg3 : memref<128x128xf32, #tpu.memory_space<any>>) dst(%11 : memref<128x128xf32, #tpu.memory_space<vmem>>)
    %c1 = arith.constant 1 : index
    %c0_11 = arith.constant 0 : index
    %c0_12 = arith.constant 0 : index
    %14 = vector.load %arg6[%c1, %c0_11, %c0_12] : memref<2x128x128xf32, #tpu.memory_space<vmem>>, vector<1x128x128xf32>
    %15 = vector.shape_cast %14 : vector<1x128x128xf32> to vector<128x128xf32>
    %cst_13 = arith.constant dense<0.000000e+00> : vector<2x128xf32>
    %16 = tpu.matmul %9, %15, %cst_13 {dimension_numbers = #tpu.dot_dimension_numbers<[1], [0], [0], [1], [0, 0, 1, 1], [], []>} : vector<2x128xf32>, vector<128x128xf32>, vector<2x128xf32> -> vector<2x128xf32>
    %c0_14 = arith.constant 0 : index
    %c0_15 = arith.constant 0 : index
    %17 = vector.load %arg4[%c0_14, %c0_15] : memref<1x128xf32, #tpu.memory_space<vmem>>, vector<1x128xf32>
    %18 = vector.broadcast %17 : vector<1x128xf32> to vector<2x128xf32>
    %19 = arith.addf %16, %18 : vector<2x128xf32>
    %c0_16 = arith.constant 0 : index
    %c0_17 = arith.constant 0 : index
    %20 = vector.load %arg5[%c0_16, %c0_17] : memref<2x128xf32, #tpu.memory_space<vmem>>, vector<2x128xf32>
    tpu.vector_store %arg5[%c0_16, %c0_17], %19 {strides = array<i32>} : memref<2x128xf32, #tpu.memory_space<vmem>>, vector<2x128xf32>,
    return
  }
}

</mosaic_0001>

<llo_original>
// kernel: fwd.1
$region0: #{fwd.1}
  #allocation0 [shape = 'u32[]', space=smem, size = 0x4, offset = 0x4, fixed_abs, tag = 'smem constant byte address 0x4 - core index']
  #allocation1 [shape = 'u32[144,128]{1,0:T(1,128)}', space=vmem, size = 0x12000, scoped, tag = 'internal scratch']
  #allocation2 [shape = 'f32[2,128,128]{2,1,0:T(8,128)}', space=vmem, size = 0x20000, scoped, tag = 'scratch operand']
  #allocation3 [shape = 's32[2]{0}', space=sflag, size = 0x8, scoped, tag = 'scratch operand']
  #allocation10 [shape = 's32[]', space=sflag, size = 0x4, offset = 0, fixed_abs, tag = 'sflag constant byte address 0x0 - dummy sync flag']
  #allocation11 [shape = 's32[]', space=sflag, size = 0x4, offset = 0, fixed_abs, tag = 'sflag constant byte address 0x0 - dummy sync flag']
  #allocation12 [shape = 'u32[]', space=smem, size = 0x4, offset = 0x44, fixed_abs, tag = 'smem constant byte address 0x44 - assertion arg 0']
  #allocation13 [shape = 'u32[]', space=smem, size = 0x4, offset = 0x48, fixed_abs, tag = 'smem constant byte address 0x48 - assertion arg 1']
  %s0 = inlined_call_operand.hbm [shape: f32[2,32], index: 0, kind: input, shape index: {}]
  %s1 = inlined_call_operand.hbm [shape: f32[32,128], index: 1, kind: input, shape index: {}]
  %s2 = inlined_call_operand.vmem [shape: f32[1,128], index: 2, kind: input, shape index: {}]
  %s3 = inlined_call_operand.hbm [shape: f32[128,128], index: 3, kind: input, shape index: {}]
  %s4 = inlined_call_operand.vmem [shape: f32[1,128], index: 4, kind: input, shape index: {}]
  %s5 = inlined_call_operand.hbm [shape: f32[2,128], index: 5, kind: output, shape index: {}]
  %s6 = sld [smem:[#allocation0]]
  $region38: #{fwd.1} parent=0
    _
  %s8 = ssub.s32 1, %s6
  %s9 = scalar_select 0, %s8, %s6
  $region1: #{fwd.1} parent=0
    #allocation4 [shape = 'u8[1024]{0}', space=vmem, size = 0x400, scoped, tag = 'input window, operand 0, single buffered']
    #allocation5 [shape = 's32[1]{0}', space=sflag, size = 0x4, scoped, tag = 'scoped memory for fwd.1']
    #allocation6 [shape = 's32[1]{0}', space=sflag, size = 0x4, scoped, tag = 'scoped memory for fwd.1']
    #allocation7 [shape = 'u8[16384]{0}', space=vmem, size = 0x4000, scoped, tag = 'input window, operand 1, single buffered']
    #allocation8 [shape = 's32[1]{0}', space=sflag, size = 0x4, scoped, tag = 'scoped memory for fwd.1']
    #allocation9 [shape = 'u8[1024]{0}', space=vmem, size = 0x400, scoped, tag = 'output window, operand 0, single buffered']
    %10 = vsyncpa [#allocation5], 0
    %11 = vsyncpa [#allocation8], 0
    %12 = vsyncpa [#allocation6], 0
    // Predicated region
    $region2: #{fwd.1} parent=1 // pred_check
      _
    $region3: #{fwd.1} parent=1 // pred_check_branch
      %14 = sbr.rel (0) target = $region5
    $region4: #{fwd.1} parent=1 // pred_region
      %s16 = ssub.s32 32, 32
      %17 = vsyncadd [#allocation5], %s16
      %s19 = sshll.u32 [#allocation4], 4
      %s20 = int_to_ptr.vmem [resolvable:$true] %s19
      %22 = dma.hbm_to_vmem [thread:$0]  %s0, 32, %s20, [#allocation5]
    $region5: #{fwd.1} parent=1 // pred_fallthru
      _
    // Predicated region
    $region6: #{fwd.1} parent=1 // pred_check
      _
    $region7: #{fwd.1} parent=1 // pred_check_branch
      %24 = sbr.rel (0) target = $region9
    $region8: #{fwd.1} parent=1 // pred_region
      %s26 = ssub.s32 512, 512
      %27 = vsyncadd [#allocation8], %s26
      %s28 = sshll.u32 [#allocation7], 4
      %s29 = int_to_ptr.vmem [resolvable:$true] %s28
      %34 = dma.hbm_to_vmem [thread:$0]  %s1, 512, %s29, [#allocation8], 128, 128, 8
    $region9: #{fwd.1} parent=1 // pred_fallthru
      _
    // Predicated region
    $region10: #{fwd.1} parent=1 // pred_check
      _
    $region11: #{fwd.1} parent=1 // pred_check_branch
      %36 = sbr.rel (0) target = $region13
    $region12: #{fwd.1} parent=1 // pred_region
      _
    $region13: #{fwd.1} parent=1 // pred_fallthru
      _
    // Predicated region
    $region14: #{fwd.1} parent=1 // pred_check
      _
    $region15: #{fwd.1} parent=1 // pred_check_branch
      %38 = sbr.rel (0) target = $region17
    $region16: #{fwd.1} parent=1 // pred_region
      _
    $region17: #{fwd.1} parent=1 // pred_fallthru
      _
    // Predicated region
    $region18: #{fwd.1} parent=1 // pred_check
      _
    $region19: #{fwd.1} parent=1 // pred_check_branch
      %40 = sbr.rel (0) target = $region21
    $region20: #{fwd.1} parent=1 // pred_region
      %41 = dma.done [#allocation5], 32
    $region21: #{fwd.1} parent=1 // pred_fallthru
      _
    // Predicated region
    $region22: #{fwd.1} parent=1 // pred_check
      _
    $region23: #{fwd.1} parent=1 // pred_check_branch
      %43 = sbr.rel (0) target = $region25
    $region24: #{fwd.1} parent=1 // pred_region
      %44 = dma.done [#allocation8], 512
    $region25: #{fwd.1} parent=1 // pred_fallthru
      _
    %s45 = scalar_lea.vmem [#allocation2], 128
    %s46 = scalar_lea.sflag [#allocation3], 1
    // Predicated region
    $region26: #{fwd.1} parent=1 // pred_check
      _
    $region27: #{fwd.1} parent=1 // pred_check_branch
      %48 = sbr.rel target = $region29
    $region28: #{fwd.1} parent=1 // pred_region
      %49 = sst [smem:[#allocation12]] [#allocation11]
      %50 = sst [smem:[#allocation13]] [#allocation10]
    $region29: #{fwd.1} parent=1 // pred_fallthru
      _
    %52 = shalt.err (0)
    %s54 = sshll.u32 %s45, 4
    %s55 = int_to_ptr.vmem [resolvable:$true] %s54
    %57 = dma.hbm_to_vmem [thread:$0]  %s3, 2048, %s55, %s46
    %v58 = vld [vmem:[#allocation4] sm:$0x3]
    %v59 = vld [vmem:[#allocation7] sm:$0xff]
    %v60 = vld [vmem:[#allocation7 + $0x8] sm:$0xff]
    %v61 = vld [vmem:[#allocation7 + $0x10] sm:$0xff]
    %v62 = vld [vmem:[#allocation7 + $0x18] sm:$0xff]
    %v63 = vld [vmem:[%s2] sm:$0x1]
    %v65 = vlaneseq
    %v66 = vshrl.u32 %v65, 7
    %v67 = vsub.s32 0, %v66
    %v68 = vrot.slane %v63, %v67
    %vm70 = vcmask 261120
    %v72 = vsel %vm70, %v58, 0
    %74 = vmatprep.subr.mxu0 0.0
    %75 = vmatpush1.msra.mxu0 %v59
    %76 = vmatprep.subr.mxu0 0.0
    %77 = vmatpush1.msra.mxu0 %v60
    %78 = vmatprep.subr.mxu0 0.0
    %79 = vmatpush1.msra.mxu0 %v61
    %80 = vmatprep.subr.mxu0 0.0
    %81 = vmatpush1.msra.mxu0 %v62
    %82 = vmatprep.subr.mxu0 0.0
    %83 = vmatpush1.msra.mxu0 0.0
    %84 = vmatprep.subr.mxu0 0.0
    %85 = vmatpush1.msra.mxu0 0.0
    %86 = vmatprep.subr.mxu0 0.0
    %87 = vmatpush1.msra.mxu0 0.0
    %88 = vmatprep.subr.mxu0 0.0
    %89 = vmatpush1.msra.mxu0 0.0
    %90 = vmatprep.subr.mxu0 0.0
    %91 = vmatpush1.msra.mxu0 0.0
    %92 = vmatprep.subr.mxu0 0.0
    %93 = vmatpush1.msra.mxu0 0.0
    %94 = vmatprep.subr.mxu0 0.0
    %95 = vmatpush1.msra.mxu0 0.0
    %96 = vmatprep.subr.mxu0 0.0
    %97 = vmatpush1.msra.mxu0 0.0
    %98 = vmatprep.subr.mxu0 0.0
    %99 = vmatpush1.msra.mxu0 0.0
    %100 = vmatprep.subr.mxu0 0.0
    %101 = vmatpush1.msra.mxu0 0.0
    %102 = vmatprep.subr.mxu0 0.0
    %103 = vmatpush1.msra.mxu0 0.0
    %104 = vmatprep.subr.mxu0 0.0
    %105 = vmatpush1.msra.mxu0 0.0
    %106 = vmatprep.subr.mxu0 0.0
    %107 = vmatpush1.msra.mxu0 0.0
    %108 = vmatprep.subr.mxu0 0.0
    %109 = vmatpush1.msra.mxu0 0.0
    %110 = vmatprep.subr.mxu0 0.0
    %111 = vmatpush1.msra.mxu0 0.0
    %112 = vmatprep.subr.mxu0 0.0
    %113 = vmatpush1.msra.mxu0 0.0
    %114 = vmatprep.subr.mxu0 0.0
    %115 = vmatpush1.msra.mxu0 0.0
    %116 = vmatprep.subr.mxu0 0.0
    %117 = vmatpush1.msra.mxu0 0.0
    %118 = vmatprep.subr.mxu0 0.0
    %119 = vmatpush1.msra.mxu0 0.0
    %120 = vmatprep.subr.mxu0 0.0
    %121 = vmatpush1.msra.mxu0 0.0
    %122 = vmatprep.subr.mxu0 0.0
    %123 = vmatpush1.msra.mxu0 0.0
    %124 = vmatprep.subr.mxu0 0.0
    %125 = vmatpush1.msra.mxu0 0.0
    %126 = vmatprep.subr.mxu0 0.0
    %127 = vmatpush1.msra.mxu0 0.0
    %128 = vmatprep.subr.mxu0 0.0
    %129 = vmatpush1.msra.mxu0 0.0
    %130 = vmatprep.subr.mxu0 0.0
    %131 = vmatpush1.msra.mxu0 0.0
    %132 = vmatprep.subr.mxu0 0.0
    %133 = vmatpush1.msra.mxu0 0.0
    %134 = vmatprep.subr.mxu0 0.0
    %135 = vmatpush1.msra.mxu0 0.0
    %136 = vmatprep.subr.mxu0 0.0
    %137 = vmatpush1.msra.mxu0 0.0
    %138 = vmatprep.mubr.f32.mxu0 0.0
    %139 = vmatmul.mubr.f32.gmra.mrb[0].mxu0 %v72
    %v140 = vpop.f32.mrb[0].mxu0
    %v141 = vadd.f32 %v68, %v140
    %v142 = vpop.f32.mrb[0].mxu0
    %143 = vdwg.mxu0
    %s144 = smul.u32 128, 1
    %s145 = sshll.u32 %s144, 4
    %146 = dma.done %s46, %s145
    %v147 = vld [vmem:[%s45] sm:$0xff]
    %v148 = vld [vmem:[%s45 + $0x8] sm:$0xff]
    %v149 = vld [vmem:[%s45 + $0x10] sm:$0xff]
    %v150 = vld [vmem:[%s45 + $0x18] sm:$0xff]
    %v151 = vld [vmem:[%s45 + $0x20] sm:$0xff]
    %v152 = vld [vmem:[%s45 + $0x28] sm:$0xff]
    %v153 = vld [vmem:[%s45 + $0x30] sm:$0xff]
    %v154 = vld [vmem:[%s45 + $0x38] sm:$0xff]
    %v155 = vld [vmem:[%s45 + $0x40] sm:$0xff]
    %v156 = vld [vmem:[%s45 + $0x48] sm:$0xff]
    %v157 = vld [vmem:[%s45 + $0x50] sm:$0xff]
    %v158 = vld [vmem:[%s45 + $0x58] sm:$0xff]
    %v159 = vld [vmem:[%s45 + $0x60] sm:$0xff]
    %v160 = vld [vmem:[%s45 + $0x68] sm:$0xff]
    %v161 = vld [vmem:[%s45 + $0x70] sm:$0xff]
    %v162 = vld [vmem:[%s45 + $0x78] sm:$0xff]
    %v163 = vld [vmem:[%s4] sm:$0x1]
    %v165 = vlaneseq
    %v166 = vshrl.u32 %v165, 7
    %v167 = vsub.s32 0, %v166
    %v168 = vrot.slane %v163, %v167
    %170 = vmatprep.subr.mxu0 0.0
    %171 = vmatpush1.msra.mxu0 %v147
    %172 = vmatprep.subr.mxu0 0.0
    %173 = vmatpush1.msra.mxu0 %v148
    %174 = vmatprep.subr.mxu0 0.0
    %175 = vmatpush1.msra.mxu0 %v149
    %176 = vmatprep.subr.mxu0 0.0
    %177 = vmatpush1.msra.mxu0 %v150
    %178 = vmatprep.subr.mxu0 0.0
    %179 = vmatpush1.msra.mxu0 %v151
    %180 = vmatprep.subr.mxu0 0.0
    %181 = vmatpush1.msra.mxu0 %v152
    %182 = vmatprep.subr.mxu0 0.0
    %183 = vmatpush1.msra.mxu0 %v153
    %184 = vmatprep.subr.mxu0 0.0
    %185 = vmatpush1.msra.mxu0 %v154
    %186 = vmatprep.subr.mxu0 0.0
    %187 = vmatpush1.msra.mxu0 %v155
    %188 = vmatprep.subr.mxu0 0.0
    %189 = vmatpush1.msra.mxu0 %v156
    %190 = vmatprep.subr.mxu0 0.0
    %191 = vmatpush1.msra.mxu0 %v157
    %192 = vmatprep.subr.mxu0 0.0
    %193 = vmatpush1.msra.mxu0 %v158
    %194 = vmatprep.subr.mxu0 0.0
    %195 = vmatpush1.msra.mxu0 %v159
    %196 = vmatprep.subr.mxu0 0.0
    %197 = vmatpush1.msra.mxu0 %v160
    %198 = vmatprep.subr.mxu0 0.0
    %199 = vmatpush1.msra.mxu0 %v161
    %200 = vmatprep.subr.mxu0 0.0
    %201 = vmatpush1.msra.mxu0 %v162
    %202 = vmatprep.subr.mxu0 0.0
    %203 = vmatpush1.msra.mxu0 0.0
    %204 = vmatprep.subr.mxu0 0.0
    %205 = vmatpush1.msra.mxu0 0.0
    %206 = vmatprep.subr.mxu0 0.0
    %207 = vmatpush1.msra.mxu0 0.0
    %208 = vmatprep.subr.mxu0 0.0
    %209 = vmatpush1.msra.mxu0 0.0
    %210 = vmatprep.subr.mxu0 0.0
    %211 = vmatpush1.msra.mxu0 0.0
    %212 = vmatprep.subr.mxu0 0.0
    %213 = vmatpush1.msra.mxu0 0.0
    %214 = vmatprep.subr.mxu0 0.0
    %215 = vmatpush1.msra.mxu0 0.0
    %216 = vmatprep.subr.mxu0 0.0
    %217 = vmatpush1.msra.mxu0 0.0
    %218 = vmatprep.subr.mxu0 0.0
    %219 = vmatpush1.msra.mxu0 0.0
    %220 = vmatprep.subr.mxu0 0.0
    %221 = vmatpush1.msra.mxu0 0.0
    %222 = vmatprep.subr.mxu0 0.0
    %223 = vmatpush1.msra.mxu0 0.0
    %224 = vmatprep.subr.mxu0 0.0
    %225 = vmatpush1.msra.mxu0 0.0
    %226 = vmatprep.subr.mxu0 0.0
    %227 = vmatpush1.msra.mxu0 0.0
    %228 = vmatprep.subr.mxu0 0.0
    %229 = vmatpush1.msra.mxu0 0.0
    %230 = vmatprep.subr.mxu0 0.0
    %231 = vmatpush1.msra.mxu0 0.0
    %232 = vmatprep.subr.mxu0 0.0
    %233 = vmatpush1.msra.mxu0 0.0
    %234 = vmatprep.mubr.f32.mxu0 0.0
    %235 = vmatmul.mubr.f32.gmra.mrb[0].mxu0 %v141
    %v236 = vpop.f32.mrb[0].mxu0
    %v237 = vadd.f32 %v168, %v236
    %v238 = vpop.f32.mrb[0].mxu0
    %239 = vdwg.mxu0
    %240 = vst [vmem:[#allocation9] sm:$0x3] %v237
    // Predicated region
    $region30: #{fwd.1} parent=1 // pred_check
      _
    $region31: #{fwd.1} parent=1 // pred_check_branch
      %242 = sbr.rel (0) target = $region33
    $region32: #{fwd.1} parent=1 // pred_region
      %s244 = ssub.s32 32, 32
      %245 = vsyncadd [#allocation6], %s244
      %s247 = sshll.u32 [#allocation9], 4
      %s248 = int_to_ptr.vmem [resolvable:$true] %s247
      %250 = dma.vmem_to_hbm [thread:$0]  %s248, 32, %s5, [#allocation6]
    $region33: #{fwd.1} parent=1 // pred_fallthru
      _
    // Predicated region
    $region34: #{fwd.1} parent=1 // pred_check
      _
    $region35: #{fwd.1} parent=1 // pred_check_branch
      %252 = sbr.rel (0) target = $region37
    $region36: #{fwd.1} parent=1 // pred_region
      %253 = dma.done [#allocation6], 32
    $region37: #{fwd.1} parent=1 // pred_fallthru
      _
    %254 = vsyncpa [#allocation5], 1
    %255 = vsyncpa [#allocation8], 1
    %256 = vsyncpa [#allocation6], 1
  %257 = vsyncmov [#allocation3]
  %s258 = vpop.sfrf %257
  %p259 = scmp.eq.s32.totalorder %s258, 0
  %p260 = pneg %p259
  %262 = shalt.err (%p260)
  %s263 = scalar_lea.sflag [#allocation3], 1
  %264 = vsyncmov %s263
  %s265 = vpop.sfrf %264
  %p266 = scmp.eq.s32.totalorder %s265, 0
  %p267 = pneg %p266
  %269 = shalt.err (%p267)

</llo_original>
